<compile_context>
chip_gen: v5e
topology: v5e:2x2
jax: 0.10.0
libtpu: 0.0.40
codegen_flags: <defaults>
</compile_context>

<pallas_src>
import functools

import jax
import jax.numpy as jnp
from jax.experimental import pallas as pl
from jax.experimental.pallas import tpu as pltpu


def _round_up(x, m):
    return -(-x // m) * m


def _sublane_multiple(itemsize):
    # Sub-32-bit dtypes pack along sublanes: 8 rows (f32), 16 (bf16/f16), 32 (int8/fp8).
    return {4: 8, 2: 16, 1: 32}.get(itemsize, 8)


def _tile_budget_bytes():
    # Per-pipeline-buffer input budget (double-buffered => ~2x in flight).
    # v5e: 16 MiB scoped-VMEM default and ~0.8 TB/s -> modest tiles already amortize
    # the ~0.35 us per-step overhead.  v6e/v7x: 1.3-3.2 TB/s -> bigger tiles cut the
    # per-step overhead to ~5% while staying well inside 32 MiB scoped / 64 MiB (v7x).
    try:
        kind = jax.devices()[0].device_kind.lower()
    except Exception:  # pragma: no cover - defensive
        kind = ""
    if "v5 lite" in kind or "v5e" in kind or "v5lite" in kind:
        return 6 * 1024 * 1024
    return 10 * 1024 * 1024


def _choose_tiling(nc, hw, itemsize):
    """Returns (row_block, hw_block, hw_tiled)."""
    sub = _sublane_multiple(itemsize)
    budget = _tile_budget_bytes()
    hw_padded = _round_up(hw, 128)                 # lane padding of the VMEM tile
    nc_padded = _round_up(nc, sub)
    group_bytes = sub * hw_padded * itemsize       # one sublane-group of rows, padded

    if group_bytes <= budget:
        # Common path: one block spans the full HW extent.
        groups = max(1, budget // group_bytes)
        row_block = groups * sub
        if row_block >= nc_padded:
            row_block = nc_padded
            # Megacore (v7x): split a whole-problem single block in two when there is
            # enough data for both TensorCores to get useful work.
            if nc_padded >= 2 * sub and nc_padded * hw_padded * itemsize > (2 << 20):
                row_block = _round_up(-(-nc_padded // 2), sub)
        return row_block, hw, False

    # Wide-row path: even one sublane-group of rows exceeds the budget.
    # Tile HW on a trailing reduction axis; keep the row block small so the
    # running-max/sum scratch stays tiny.
    row_block = min(nc_padded, 8 * sub)
    hw_block = max(128, (budget // (row_block * itemsize)) // 128 * 128)
    hw_block = min(hw_block, hw_padded)
    return row_block, hw_block, True


def _pool_kernel(x_ref, out_ref, *, inv_hw):
    """Single-pass row reduce: the block covers the full H*W extent."""
    x = x_ref[...]                                               # (RB, HW)
    row_max = jnp.max(x, axis=-1, keepdims=True)                 # exact in native dtype
    row_sum = jnp.sum(x, axis=-1, keepdims=True, dtype=jnp.float32)
    out_ref[...] = jnp.concatenate(
        [row_max.astype(out_ref.dtype),
         (row_sum * inv_hw).astype(out_ref.dtype)], axis=1)      # one fused (RB, 2) store


def _pool_kernel_hw_tiled(x_ref, out_ref, max_sc, sum_sc, *, inv_hw, hw, hw_block,
                          needs_mask):
    """Accumulating row reduce: H*W tiled on the trailing ('arbitrary') grid axis."""
    j = pl.program_id(1)

    @pl.when(j == 0)
    def _():
        max_sc[...] = jnp.full_like(max_sc, -jnp.inf)
        sum_sc[...] = jnp.zeros_like(sum_sc)

    x = x_ref[...]                                               # (RB, HWB)
    if needs_mask:
        # Partial last HW tile: out-of-bounds lanes hold garbage; mask them so they
        # cannot pollute the max/sum of valid rows.
        col = j * hw_block + jax.lax.broadcasted_iota(jnp.int32, x.shape, 1)
        valid = col < hw
        x_max = jnp.where(valid, x, jnp.asarray(-jnp.inf, dtype=x.dtype))
        x_sum = jnp.where(valid, x, jnp.zeros_like(x))
    else:
        x_max = x
        x_sum = x

    max_sc[...] = jnp.maximum(
        max_sc[...], jnp.max(x_max, axis=-1, keepdims=True).astype(jnp.float32))
    sum_sc[...] = sum_sc[...] + jnp.sum(x_sum, axis=-1, keepdims=True,
                                        dtype=jnp.float32)

    @pl.when(j == pl.num_programs(1) - 1)
    def _():
        out_ref[...] = jnp.concatenate(
            [max_sc[...].astype(out_ref.dtype),
             (sum_sc[...] * inv_hw).astype(out_ref.dtype)], axis=1)


def adaptive_concat_pool2d(x):
    """x: (N, C, H, W) -> (N, 2*C, 1, 1) == torch.cat([maxpool1(x), avgpool1(x)], dim=1)."""
    N, C, H, W = x.shape
    nc, hw = N * C, H * W
    itemsize = x.dtype.itemsize
    sub = _sublane_multiple(itemsize)

    x2d = x.reshape(nc, hw)                       # free row-major view, no HBM copy

    row_block, hw_block, hw_tiled = _choose_tiling(nc, hw, itemsize)
    num_row_blocks = pl.cdiv(nc, row_block)
    ncp = num_row_blocks * row_block              # padded output rows (sliced off below)
    inv_hw = 1.0 / hw

    # Padded in-flight VMEM footprint: double-buffered input + output + scratch.
    in_tile = _round_up(row_block, sub) * _round_up(hw_block, 128) * itemsize
    out_tile = _round_up(row_block, sub) * 128 * itemsize
    scratch_bytes = 2 * _round_up(row_block, sub) * 128 * 4 if hw_tiled else 0
    in_flight = 2 * in_tile + 2 * out_tile + scratch_bytes

    compiler_kwargs = {}
    if in_flight > 12 * 1024 * 1024:
        # v5e scoped-VMEM default is only 16 MiB (v6e/v7x: 32 MiB); raise explicitly.
        # Cap at 48 MiB so v7x (64 MiB physical per TC) keeps headroom for internals.
        compiler_kwargs["vmem_limit_bytes"] = int(
            min(max(in_flight * 1.5, 32 * 1024 * 1024), 48 * 1024 * 1024))

    if not hw_tiled:
        fused = pl.pallas_call(
            functools.partial(_pool_kernel, inv_hw=inv_hw),
            out_shape=jax.ShapeDtypeStruct((ncp, 2), x.dtype),
            grid_spec=pltpu.PrefetchScalarGridSpec(
                num_scalar_prefetch=0,
                grid=(num_row_blocks,),
                in_specs=[pl.BlockSpec((row_block, hw), lambda i: (i, 0))],
                out_specs=pl.BlockSpec((row_block, 2), lambda i: (i, 0)),
            ),
            compiler_params=pltpu.CompilerParams(
                dimension_semantics=("parallel",), **compiler_kwargs),
        )(x2d)
    else:
        num_hw_blocks = pl.cdiv(hw, hw_block)
        needs_mask = (hw % hw_block) != 0
        fused = pl.pallas_call(
            functools.partial(_pool_kernel_hw_tiled, inv_hw=inv_hw, hw=hw,
                              hw_block=hw_block, needs_mask=needs_mask),
            out_shape=jax.ShapeDtypeStruct((ncp, 2), x.dtype),
            grid_spec=pltpu.PrefetchScalarGridSpec(
                num_scalar_prefetch=0,
                grid=(num_row_blocks, num_hw_blocks),
                in_specs=[pl.BlockSpec((row_block, hw_block), lambda i, j: (i, j))],
                out_specs=pl.BlockSpec((row_block, 2), lambda i, j: (i, 0)),
                scratch_shapes=[pltpu.VMEM((row_block, 1), jnp.float32),
                                pltpu.VMEM((row_block, 1), jnp.float32)],
            ),
            compiler_params=pltpu.CompilerParams(
                dimension_semantics=("parallel", "arbitrary"), **compiler_kwargs),
        )(x2d)

    # fused[:, 0] = per-(n, c) max, fused[:, 1] = per-(n, c) mean; padded rows dropped.
    max_out = fused[:nc, 0].reshape(N, C, 1, 1)
    avg_out = fused[:nc, 1].reshape(N, C, 1, 1)
    # torch.cat([mp(x), ap(x)], dim=1): max channels first, then avg channels.
    return jnp.concatenate([max_out, avg_out], axis=1)


if __name__ == "__main__":
    key = jax.random.PRNGKey(0)
    x = jax.random.normal(key, (2, 4, 16, 16), dtype=jnp.float32)

    out = jax.block_until_ready(adaptive_concat_pool2d(x))

    # Reference check in plain JAX.
    ref_max = jnp.max(x, axis=(2, 3), keepdims=True)
    ref_avg = jnp.mean(x, axis=(2, 3), keepdims=True)
    ref = jnp.concatenate([ref_max, ref_avg], axis=1)

    assert out.shape == (2, 8, 1, 1), out.shape
    assert jnp.allclose(out, ref, atol=1e-5, rtol=1e-5), "mismatch vs reference"
    print("KERNEL_OK")
</pallas_src>

<mosaic_0001>
module attributes {stable_mosaic.version = 11 : i64} {
  func.func @_pool_kernel(%arg0: i32, %arg1: memref<8x256xf32, #tpu.memory_space<vmem>>, %arg2: memref<8x2xf32, #tpu.memory_space<vmem>>) attributes {dimension_semantics = [#tpu.dimension_semantics<parallel>], iteration_bounds = array<i64: 1>, scalar_prefetch = 0 : i64, scratch_operands = 0 : i64, tpu.core_type = #tpu.core_type<tc>, window_params = [{transform_indices = @transform_0, window_bounds = array<i64: 8, 256>}, {transform_indices = @transform_1, window_bounds = array<i64: 8, 2>}]} {
    %c0 = arith.constant 0 : index
    %c0_0 = arith.constant 0 : index
    %0 = vector.load %arg1[%c0, %c0_0] : memref<8x256xf32, #tpu.memory_space<vmem>>, vector<8x256xf32>
    %cst = arith.constant dense<0xFF800000> : vector<8xf32>
    %1 = vector.multi_reduction <maximumf>, %0, %cst [1] : vector<8x256xf32> to vector<8xf32>
    %2 = vector.shape_cast %1 : vector<8xf32> to vector<8x1xf32>
    %cst_1 = arith.constant dense<0.000000e+00> : vector<8xf32>
    %3 = vector.multi_reduction <add>, %0, %cst_1 [1] : vector<8x256xf32> to vector<8xf32>
    %4 = vector.shape_cast %3 : vector<8xf32> to vector<8x1xf32>
    %cst_2 = arith.constant 3.906250e-03 : f32
    %5 = vector.broadcast %cst_2 : f32 to vector<8x1xf32>
    %6 = arith.mulf %4, %5 : vector<8x1xf32>
    %7 = tpu.concatenate %2, %6 in 1 : vector<8x1xf32>, vector<8x1xf32> -> vector<8x2xf32>
    %c0_3 = arith.constant 0 : index
    %c0_4 = arith.constant 0 : index
    %8 = vector.load %arg2[%c0_3, %c0_4] : memref<8x2xf32, #tpu.memory_space<vmem>>, vector<8x2xf32>
    tpu.vector_store %arg2[%c0_3, %c0_4], %7 {strides = array<i32>} : memref<8x2xf32, #tpu.memory_space<vmem>>, vector<8x2xf32>,
    return
  }
  func.func @transform_0(%arg0: i32) -> (i32, i32) {
    %c0_i32 = arith.constant 0 : i32
    %c0_i32_0 = arith.constant 0 : i32
    return %arg0, %c0_i32 : i32, i32
  }
  func.func @transform_1(%arg0: i32) -> (i32, i32) {
    %c0_i32 = arith.constant 0 : i32
    %c0_i32_0 = arith.constant 0 : i32
    return %arg0, %c0_i32 : i32, i32
  }
}

</mosaic_0001>

<llo_original>
// kernel: tpu_custom_call.1
$region0: #{tpu_custom_call.1}
  #allocation0 [shape = 'u32[]', space=smem, size = 0x4, offset = 0x4, fixed_abs, tag = 'smem constant byte address 0x4 - core index']
  #allocation1 [shape = 'u32[72,128]{1,0:T(1,128)}', space=vmem, size = 0x9000, scoped, tag = 'internal scratch']
  %s0 = inlined_call_operand.hbm [shape: f32[8,256], index: 0, kind: input, shape index: {}]
  %s1 = inlined_call_operand.vmem [shape: f32[8,2], index: 1, kind: output, shape index: {}]
  %s2 = sld [smem:[#allocation0]]
  $region18: #{tpu_custom_call.1} parent=0
    _
  %s4 = ssub.s32 1, %s2
  %s5 = scalar_select 0, %s4, %s2
  $region1: #{tpu_custom_call.1} parent=0
    #allocation2 [shape = 'u8[8192]{0}', space=vmem, size = 0x2000, scoped, tag = 'input window, operand 0, single buffered']
    #allocation3 [shape = 's32[1]{0}', space=sflag, size = 0x4, scoped, tag = 'scoped memory for tpu_custom_call.1']
    %6 = vsyncpa [#allocation3], 0
    // Predicated region
    $region2: #{tpu_custom_call.1} parent=1 // pred_check
      _
    $region3: #{tpu_custom_call.1} parent=1 // pred_check_branch
      %8 = sbr.rel (0) target = $region5
    $region4: #{tpu_custom_call.1} parent=1 // pred_region
      %10 = vsyncadd [#allocation3], 0
      %s12 = sshll.u32 %s0, 4
      %s13 = int_to_ptr.hbm [resolvable:$true] %s12
      %s14 = sshll.u32 [#allocation2], 4
      %s15 = int_to_ptr.vmem [resolvable:$true] %s14
      %17 = dma.hbm_to_vmem [thread:$0]  %s13, 256, %s15, [#allocation3]
    $region5: #{tpu_custom_call.1} parent=1 // pred_fallthru
      _
    // Predicated region
    $region6: #{tpu_custom_call.1} parent=1 // pred_check
      _
    $region7: #{tpu_custom_call.1} parent=1 // pred_check_branch
      %19 = sbr.rel (0) target = $region9
    $region8: #{tpu_custom_call.1} parent=1 // pred_region
      %21 = dma.done [#allocation3], 256
    $region9: #{tpu_custom_call.1} parent=1 // pred_fallthru
      _
    %v22 = vld [vmem:[#allocation2] sm:$0xff]
    %v23 = vld [vmem:[#allocation2 + $0x8] sm:$0xff]
    %v24 = vmax.f32 %v22, %v23
    %25 = vmax.xlane.f32.xlu0 %v24
    %v26 = vpop.xlane.xlu0 %25
    %v27 = vadd.f32 %v22, %v23
    %28 = vadd.xlane.f32.xlu0 %v27
    %v29 = vpop.xlane.xlu0 %28
    %v30 = vmul.f32 %v29, 0.00390625
    %vm31 = vcmask 7168
    %v32 = vsel %vm31, %v26, %v30
    %vm33 = vcmask 15360
    %34 = vst.msk [vmem:[%s1] sm:$0xff] %vm33, %v32
    // Predicated region
    $region10: #{tpu_custom_call.1} parent=1 // pred_check
      _
    $region11: #{tpu_custom_call.1} parent=1 // pred_check_branch
      %36 = sbr.rel (0) target = $region13
    $region12: #{tpu_custom_call.1} parent=1 // pred_region
      _
    $region13: #{tpu_custom_call.1} parent=1 // pred_fallthru
      _
    // Predicated region
    $region14: #{tpu_custom_call.1} parent=1 // pred_check
      _
    $region15: #{tpu_custom_call.1} parent=1 // pred_check_branch
      %38 = sbr.rel (0) target = $region17
    $region16: #{tpu_custom_call.1} parent=1 // pred_region
      _
    $region17: #{tpu_custom_call.1} parent=1 // pred_fallthru
      _
    %39 = vsyncpa [#allocation3], 1

</llo_original>
